<compile_context>
chip_gen: v7x
topology: tpu7x:2x2x1
jax: 0.10.0
libtpu: 0.0.40
codegen_flags: <defaults>
</compile_context>

<pallas_src>
import functools

import jax
import jax.numpy as jnp
from jax import lax
from jax.experimental import pallas as pl
from jax.experimental.pallas import tpu as pltpu


# ----------------------------------------------------------------------------
# Small helpers
# ----------------------------------------------------------------------------

def bn_fold(gamma, beta, mean, var, eps=1e-5):
    """Eval-mode BatchNorm == per-channel (scale, shift)."""
    s = gamma / jnp.sqrt(var + eps)
    return s, beta - mean * s


def _shift_lanes(z, delta):
    """result[:, q] = z[:, (q + delta) % S]  (wrapped lanes are masked by caller).

    Written as explicit slices+concat so the shift direction is unambiguous.
    TODO(synk): pltpu.roll(z, -delta, axis=1) is the XLU-native equivalent.
    """
    s = z.shape[-1]
    i = delta % s
    if i == 0:
        return z
    return jnp.concatenate([z[:, i:], z[:, :i]], axis=1)


# ----------------------------------------------------------------------------
# Fused Pallas kernel: all four DBB branches + final add.
# ----------------------------------------------------------------------------

def _dbb_fused_kernel(x_ref, wbig_ref, bbig_ref, wtap_ref, ctap_ref, mask_ref,
                      o_ref, *, K, pad, W, Cout, Ctot):
    """Shapes (S = H*W on lanes, channels on sublanes):
       x_ref   : (B, Cin, S)          input images (flattened NCHW)
       wbig_ref: (Cbig, Cin)          merged 1x1 stage weights
       bbig_ref: (Cbig, 1)            merged 1x1 stage biases / BN shifts
       wtap_ref: (K*K*Cout, Ctot)     all KxK taps stacked on output rows
       ctap_ref: (K*K, Cout, 1)       per-tap out-of-range (border) constant
       mask_ref: (K*K, S)             1.0 where the tap read is in-range
       o_ref   : (B, Cout, S)         flattened NCHW output
    """
    # weight / param loads hoisted once per grid step
    w_big = wbig_ref[...]
    b_big = bbig_ref[...]
    w_tap = wtap_ref[...]
    c_tap = ctap_ref[...]

    B = x_ref.shape[0]
    S = x_ref.shape[2]

    for b in range(B):                                  # static unroll over images
        x = x_ref[b].astype(jnp.float32)                # (Cin, S)

        # One MXU push: [dbb_1x1 conv+BN | x | idconv1+bn1 (y4) | avg.conv+bn (y3)]
        y = jnp.dot(w_big, x, preferred_element_type=jnp.float32) + b_big
        u = y[Cout:Cout + Ctot]                         # (Ctot, S): [x ; y4 ; y3]

        # One MXU push for ALL K*K taps: rows t*Cout:(t+1)*Cout are tap t's result.
        z_all = jnp.dot(w_tap, u, preferred_element_type=jnp.float32)

        # 3 partial accumulators (ILP); acc[0] seeded with the 1x1 branch + all
        # additive BN shifts (already folded into b_big's first Cout rows).
        acc = [y[0:Cout],
               jnp.zeros((Cout, S), jnp.float32),
               jnp.zeros((Cout, S), jnp.float32)]

        for kh in range(K):
            for kw in range(K):
                t = kh * K + kw
                dh, dw = kh - pad, kw - pad
                z = z_all[t * Cout:(t + 1) * Cout]      # (Cout, S), 8-aligned slice
                if dh == 0 and dw == 0:
                    contrib = z                         # centre tap: no shift/border
                else:
                    zs = _shift_lanes(z, dh * W + dw)   # read at output+offset
                    m = mask_ref[t:t + 1, :]            # (1, S), 1.0 = in-range
                    contrib = jnp.where(m > 0.5, zs, c_tap[t])
                acc[t % 3] = acc[t % 3] + contrib

        o_ref[b] = (acc[0] + acc[1] + acc[2]).astype(o_ref.dtype)


# ----------------------------------------------------------------------------
# Wrapper: fold BN into weights, build merged matrices, one pallas_call.
# ----------------------------------------------------------------------------

def dbb_forward_pallas(x_nchw, P, imgs_per_step=1):
    """Fused DiverseBranchBlockNOAct forward. x: NCHW float32. Returns NCHW."""
    N, Cin, H, W = x_nchw.shape
    K, pad, eps = P["kernel_size"], P["padding"], P["eps"]
    S = H * W
    KK = K * K
    Cout = P["w_origin"].shape[-1]
    Cint = P["w_idconv"].shape[-1]
    Ctot = Cin + Cint + Cout
    Cbig = Cout + Ctot
    # TODO(synk): groups > 1 / stride > 1 are not implemented.

    s1, b1 = bn_fold(*P["bn_origin"], eps=eps)
    s2, b2 = bn_fold(*P["bn_1x1"], eps=eps)
    s3a, b3a = bn_fold(*P["bn_avg_pad"], eps=eps)
    s3b, b3b = bn_fold(*P["bn_avgbn"], eps=eps)
    s4a, b4a = bn_fold(*P["bn_kxk_1"], eps=eps)
    s4b, b4b = bn_fold(*P["bn_kxk_2"], eps=eps)

    # Merged 1x1-stage matrix (contraction = Cin, output rows on sublanes):
    #   rows [0:Cout]          dbb_1x1 conv + BN
    #   rows [Cout:Cout+Cin]   identity (x passthrough for the KxK origin conv)
    #   next Cint rows         idconv1 (weight + id) + BN1            -> y4
    #   last Cout rows         dbb_avg.conv + BN, prescaled by s_avgbn/K^2 -> y3
    w2s = (P["w_1x1"][0, 0] * s2).T                                  # (Cout, Cin)
    w4a = ((P["w_idconv"] + P["id_tensor"])[0, 0] * s4a).T           # (Cint, Cin)
    alpha3 = s3a * s3b / (K * K)
    w3s = (P["w_avg_conv"][0, 0] * alpha3).T                         # (Cout, Cin)
    b3a_s = b3a * s3b / (K * K)              # BNAndPad border value, prescaled
    w_big = jnp.concatenate(
        [w2s, jnp.eye(Cin, dtype=jnp.float32), w4a, w3s], axis=0
    ).astype(jnp.float32)                                            # (Cbig, Cin)
    # All output-additive BN shifts (b1, b2, b3b, b4b) fold into the first rows.
    b_big = jnp.concatenate(
        [b1 + b2 + b3b + b4b, jnp.zeros((Cin,), jnp.float32), b4a, b3a_s]
    ).reshape(Cbig, 1).astype(jnp.float32)

    # Per-tap KxK weights (BN folded), all taps stacked on output rows so the
    # whole tap loop is ONE MXU push:  [origin | kxk2 | avgpool-identity].
    w1 = (P["w_origin"] * s1).reshape(KK, Cin, Cout)
    w4 = (P["w_kxk_2"] * s4b).reshape(KK, Cint, Cout)
    w_tap = jnp.concatenate(
        [jnp.transpose(w1, (0, 2, 1)),                               # (KK,Cout,Cin)
         jnp.transpose(w4, (0, 2, 1)),                               # (KK,Cout,Cint)
         jnp.broadcast_to(jnp.eye(Cout, dtype=jnp.float32), (KK, Cout, Cout))],
        axis=2).reshape(KK * Cout, Ctot).astype(jnp.float32)

    # Per-tap out-of-range constant: x border is 0, y4 border is b4a (BNAndPad),
    # y3 border is b3a_s (BNAndPad, prescaled); avgpool weights are identity.
    c_tap = (jnp.einsum("tic,i->tc", w4, b4a) + b3a_s
             ).reshape(KK, Cout, 1).astype(jnp.float32)

    # Per-tap validity masks over the flattened spatial axis.
    ii, jj = jnp.meshgrid(jnp.arange(H), jnp.arange(W), indexing="ij")
    mrows = []
    for kh in range(K):
        for kw in range(K):
            dh, dw = kh - pad, kw - pad
            v = (ii + dh >= 0) & (ii + dh < H) & (jj + dw >= 0) & (jj + dw < W)
            mrows.append(v.reshape(S))
    masks = jnp.stack(mrows).astype(jnp.float32)                     # (KK, S)

    x_flat = x_nchw.reshape(N, Cin, S)      # NCHW flattened; free metadata reshape

    B = imgs_per_step
    assert N % B == 0, "imgs_per_step must divide the batch"
    kernel = functools.partial(_dbb_fused_kernel, K=K, pad=pad, W=W,
                               Cout=Cout, Ctot=Ctot)

    out = pl.pallas_call(
        kernel,
        out_shape=jax.ShapeDtypeStruct((N, Cout, S), x_nchw.dtype),
        grid=(N // B,),
        in_specs=[
            pl.BlockSpec((B, Cin, S), lambda n: (n, 0, 0)),
            pl.BlockSpec((Cbig, Cin), lambda n: (0, 0)),
            pl.BlockSpec((Cbig, 1), lambda n: (0, 0)),
            pl.BlockSpec((KK * Cout, Ctot), lambda n: (0, 0)),
            pl.BlockSpec((KK, Cout, 1), lambda n: (0, 0, 0)),
            pl.BlockSpec((KK, S), lambda n: (0, 0)),
        ],
        out_specs=pl.BlockSpec((B, Cout, S), lambda n: (n, 0, 0)),
        compiler_params=pltpu.CompilerParams(
            dimension_semantics=("parallel",)),     # batch across TCs on v7x
    )(x_flat, w_big, b_big, w_tap, c_tap, masks)
    return out.reshape(N, Cout, H, W)


# ----------------------------------------------------------------------------
# Pure-JAX reference (unfused, mirrors the PyTorch module op-for-op, NHWC)
# ----------------------------------------------------------------------------

def conv_nhwc_ref(x, w_hwio, pad):
    return lax.conv_general_dilated(
        x, w_hwio, window_strides=(1, 1),
        padding=((pad, pad), (pad, pad)),
        dimension_numbers=("NHWC", "HWIO", "NHWC"))


def pad_with_values_nhwc(x, pad_vals, p):
    N, H, W, C = x.shape
    out = jnp.broadcast_to(pad_vals.reshape(1, 1, 1, C),
                           (N, H + 2 * p, W + 2 * p, C)).astype(x.dtype)
    return out.at[:, p:p + H, p:p + W, :].set(x)


def dbb_forward_ref(x, P):
    pad, K, eps = P["padding"], P["kernel_size"], P["eps"]

    s, t = bn_fold(*P["bn_origin"], eps=eps)
    out1 = conv_nhwc_ref(x, P["w_origin"], pad) * s + t

    s, t = bn_fold(*P["bn_1x1"], eps=eps)
    out2 = conv_nhwc_ref(x, P["w_1x1"], 0) * s + t

    s_a, t_a = bn_fold(*P["bn_avg_pad"], eps=eps)
    y3 = conv_nhwc_ref(x, P["w_avg_conv"], 0) * s_a + t_a
    y3p = pad_with_values_nhwc(y3, t_a, pad)
    ap = lax.reduce_window(y3p, 0.0, lax.add, (1, K, K, 1), (1, 1, 1, 1),
                           "VALID") / (K * K)
    s_ab, t_ab = bn_fold(*P["bn_avgbn"], eps=eps)
    out3 = ap * s_ab + t_ab

    w_id = P["w_idconv"] + P["id_tensor"]
    s_b1, t_b1 = bn_fold(*P["bn_kxk_1"], eps=eps)
    y4 = conv_nhwc_ref(x, w_id, 0) * s_b1 + t_b1
    y4p = pad_with_values_nhwc(y4, t_b1, pad)
    s_b2, t_b2 = bn_fold(*P["bn_kxk_2"], eps=eps)
    out4 = conv_nhwc_ref(y4p, P["w_kxk_2"], 0) * s_b2 + t_b2

    return out1 + out2 + out3 + out4


# ----------------------------------------------------------------------------
# Deterministic parameter construction (eval-mode BN stats), HWIO weights.
# ----------------------------------------------------------------------------

def make_params(key, Cin, Cout, K, internal, padding, eps=1e-5):
    ks = jax.random.split(key, 16)

    def bn(k, c):
        k1, k2, k3, k4 = jax.random.split(k, 4)
        gamma = jax.random.uniform(k1, (c,), jnp.float32, 0.5, 1.5)
        beta = jax.random.normal(k2, (c,), jnp.float32) * 0.1
        mean = jax.random.normal(k3, (c,), jnp.float32) * 0.1
        var = jax.random.uniform(k4, (c,), jnp.float32, 0.5, 1.5)
        return gamma, beta, mean, var

    # identity tensor of IdentityBasedConv1x1 (groups=1): HWIO (1,1,Cin,Cin)
    id_t = jnp.eye(Cin, dtype=jnp.float32).reshape(1, 1, Cin, Cin)

    return {
        "kernel_size": K,
        "padding": padding,
        "eps": eps,
        "w_origin": jax.random.normal(ks[0], (K, K, Cin, Cout), jnp.float32) * 0.1,
        "bn_origin": bn(ks[1], Cout),
        "w_1x1": jax.random.normal(ks[2], (1, 1, Cin, Cout), jnp.float32) * 0.1,
        "bn_1x1": bn(ks[3], Cout),
        "w_avg_conv": jax.random.normal(ks[4], (1, 1, Cin, Cout), jnp.float32) * 0.1,
        "bn_avg_pad": bn(ks[5], Cout),
        "bn_avgbn": bn(ks[6], Cout),
        # IdentityBasedConv1x1: kernel = weight + id_tensor (weight is zero-init
        # in PyTorch; small random weight here to exercise the path).
        "w_idconv": jax.random.normal(ks[7], (1, 1, Cin, internal), jnp.float32) * 0.05,
        "id_tensor": id_t,
        "bn_kxk_1": bn(ks[8], internal),
        "w_kxk_2": jax.random.normal(ks[9], (K, K, internal, Cout), jnp.float32) * 0.1,
        "bn_kxk_2": bn(ks[10], Cout),
    }


# ----------------------------------------------------------------------------
# Main
# ----------------------------------------------------------------------------

if __name__ == "__main__":
    N, Cin, H, W = 2, 4, 16, 16
    Cout, K = 8, 3
    padding = K // 2
    internal = Cin   # groups < out_channels -> internal_channels_1x1_3x3 = in_channels

    key = jax.random.PRNGKey(0)
    kx, kp = jax.random.split(key)
    x_nchw = jax.random.normal(kx, (N, Cin, H, W), jnp.float32)   # PyTorch layout
    params = make_params(kp, Cin, Cout, K, internal, padding)

    fwd = jax.jit(lambda xx: dbb_forward_pallas(xx, params))
    out_nchw = jax.block_until_ready(fwd(x_nchw))
    assert out_nchw.shape == (N, Cout, H, W)

    x_nhwc = jnp.transpose(x_nchw, (0, 2, 3, 1))
    ref_nchw = jnp.transpose(dbb_forward_ref(x_nhwc, params), (0, 3, 1, 2))
    max_err = float(jnp.max(jnp.abs(out_nchw - ref_nchw)))
    assert jnp.allclose(out_nchw, ref_nchw, rtol=1e-4, atol=1e-4), max_err

    print("KERNEL_OK")
</pallas_src>

<mosaic_0001>
module attributes {stable_mosaic.version = 11 : i64} {
  func.func @_dbb_fused_kernel(%arg0: i32, %arg1: memref<1x4x256xf32, #tpu.memory_space<vmem>>, %arg2: memref<24x4xf32, #tpu.memory_space<vmem>>, %arg3: memref<24x1xf32, #tpu.memory_space<vmem>>, %arg4: memref<72x16xf32, #tpu.memory_space<vmem>>, %arg5: memref<9x8x1xf32, #tpu.memory_space<vmem>>, %arg6: memref<9x256xf32, #tpu.memory_space<vmem>>, %arg7: memref<1x8x256xf32, #tpu.memory_space<vmem>>) attributes {dimension_semantics = [#tpu.dimension_semantics<parallel>], iteration_bounds = array<i64: 2>, scalar_prefetch = 0 : i64, scratch_operands = 0 : i64, tpu.core_type = #tpu.core_type<tc>, window_params = [{transform_indices = @transform_0, window_bounds = array<i64: 1, 4, 256>}, {pipeline_mode = #tpu.pipeline_mode<synchronous>, transform_indices = @transform_1, window_bounds = array<i64: 24, 4>}, {pipeline_mode = #tpu.pipeline_mode<synchronous>, transform_indices = @transform_2, window_bounds = array<i64: 24, 1>}, {pipeline_mode = #tpu.pipeline_mode<synchronous>, transform_indices = @transform_3, window_bounds = array<i64: 72, 16>}, {pipeline_mode = #tpu.pipeline_mode<synchronous>, transform_indices = @transform_4, window_bounds = array<i64: 9, 8, 1>}, {pipeline_mode = #tpu.pipeline_mode<synchronous>, transform_indices = @transform_5, window_bounds = array<i64: 9, 256>}, {transform_indices = @transform_6, window_bounds = array<i64: 1, 8, 256>}]} {
    %c0 = arith.constant 0 : index
    %c0_0 = arith.constant 0 : index
    %0 = vector.load %arg2[%c0, %c0_0] : memref<24x4xf32, #tpu.memory_space<vmem>>, vector<24x4xf32>
    %c0_1 = arith.constant 0 : index
    %c0_2 = arith.constant 0 : index
    %1 = vector.load %arg3[%c0_1, %c0_2] : memref<24x1xf32, #tpu.memory_space<vmem>>, vector<24x1xf32>
    %c0_3 = arith.constant 0 : index
    %c0_4 = arith.constant 0 : index
    %2 = vector.load %arg4[%c0_3, %c0_4] : memref<72x16xf32, #tpu.memory_space<vmem>>, vector<72x16xf32>
    %c0_5 = arith.constant 0 : index
    %c0_6 = arith.constant 0 : index
    %c0_7 = arith.constant 0 : index
    %3 = vector.load %arg5[%c0_5, %c0_6, %c0_7] : memref<9x8x1xf32, #tpu.memory_space<vmem>>, vector<9x8x1xf32>
    %c0_8 = arith.constant 0 : index
    %c0_9 = arith.constant 0 : index
    %c0_10 = arith.constant 0 : index
    %4 = vector.load %arg1[%c0_8, %c0_9, %c0_10] : memref<1x4x256xf32, #tpu.memory_space<vmem>>, vector<1x4x256xf32>
    %5 = vector.shape_cast %4 : vector<1x4x256xf32> to vector<4x256xf32>
    %cst = arith.constant dense<0.000000e+00> : vector<24x256xf32>
    %6 = tpu.matmul %0, %5, %cst {dimension_numbers = #tpu.dot_dimension_numbers<[1], [0], [0], [1], [0, 0, 1, 1], [], []>} : vector<24x4xf32>, vector<4x256xf32>, vector<24x256xf32> -> vector<24x256xf32>
    %7 = vector.broadcast %1 : vector<24x1xf32> to vector<24x256xf32>
    %8 = arith.addf %6, %7 : vector<24x256xf32>
    %9 = vector.extract_strided_slice %8 {offsets = [8, 0], sizes = [16, 256], strides = [1, 1]} : vector<24x256xf32> to vector<16x256xf32>
    %cst_11 = arith.constant dense<0.000000e+00> : vector<72x256xf32>
    %10 = tpu.matmul %2, %9, %cst_11 {dimension_numbers = #tpu.dot_dimension_numbers<[1], [0], [0], [1], [0, 0, 1, 1], [], []>} : vector<72x16xf32>, vector<16x256xf32>, vector<72x256xf32> -> vector<72x256xf32>
    %11 = vector.extract_strided_slice %8 {offsets = [0, 0], sizes = [8, 256], strides = [1, 1]} : vector<24x256xf32> to vector<8x256xf32>
    %cst_12 = arith.constant 0.000000e+00 : f32
    %12 = vector.broadcast %cst_12 : f32 to vector<8x256xf32>
    %cst_13 = arith.constant 0.000000e+00 : f32
    %13 = vector.broadcast %cst_13 : f32 to vector<8x256xf32>
    %14 = vector.extract_strided_slice %10 {offsets = [0, 0], sizes = [8, 256], strides = [1, 1]} : vector<72x256xf32> to vector<8x256xf32>
    %15 = vector.extract_strided_slice %14 {offsets = [0, 239], sizes = [8, 17], strides = [1, 1]} : vector<8x256xf32> to vector<8x17xf32>
    %16 = vector.extract_strided_slice %14 {offsets = [0, 0], sizes = [8, 239], strides = [1, 1]} : vector<8x256xf32> to vector<8x239xf32>
    %17 = tpu.concatenate %15, %16 in 1 : vector<8x17xf32>, vector<8x239xf32> -> vector<8x256xf32>
    %c0_14 = arith.constant 0 : index
    %c0_15 = arith.constant 0 : index
    %18 = vector.load %arg6[%c0_14, %c0_15] : memref<9x256xf32, #tpu.memory_space<vmem>>, vector<1x256xf32>
    %cst_16 = arith.constant 5.000000e-01 : f32
    %19 = vector.broadcast %cst_16 : f32 to vector<1x256xf32>
    %20 = arith.cmpf ogt, %18, %19 : vector<1x256xf32>
    %21 = vector.extract_strided_slice %3 {offsets = [0, 0, 0], sizes = [1, 8, 1], strides = [1, 1, 1]} : vector<9x8x1xf32> to vector<1x8x1xf32>
    %22 = vector.shape_cast %21 : vector<1x8x1xf32> to vector<8x1xf32>
    %23 = vector.shape_cast %20 : vector<1x256xi1> to vector<1x256xi1>
    %24 = vector.broadcast %23 : vector<1x256xi1> to vector<8x256xi1>
    %25 = vector.shape_cast %22 : vector<8x1xf32> to vector<8x1xf32>
    %26 = vector.broadcast %25 : vector<8x1xf32> to vector<8x256xf32>
    %27 = arith.select %24, %17, %26 : vector<8x256xi1>, vector<8x256xf32>
    %28 = arith.addf %11, %27 : vector<8x256xf32>
    %29 = vector.extract_strided_slice %10 {offsets = [8, 0], sizes = [8, 256], strides = [1, 1]} : vector<72x256xf32> to vector<8x256xf32>
    %30 = vector.extract_strided_slice %29 {offsets = [0, 240], sizes = [8, 16], strides = [1, 1]} : vector<8x256xf32> to vector<8x16xf32>
    %31 = vector.extract_strided_slice %29 {offsets = [0, 0], sizes = [8, 240], strides = [1, 1]} : vector<8x256xf32> to vector<8x240xf32>
    %32 = tpu.concatenate %30, %31 in 1 : vector<8x16xf32>, vector<8x240xf32> -> vector<8x256xf32>
    %c1 = arith.constant 1 : index
    %c0_17 = arith.constant 0 : index
    %33 = vector.load %arg6[%c1, %c0_17] : memref<9x256xf32, #tpu.memory_space<vmem>>, vector<1x256xf32>
    %cst_18 = arith.constant 5.000000e-01 : f32
    %34 = vector.broadcast %cst_18 : f32 to vector<1x256xf32>
    %35 = arith.cmpf ogt, %33, %34 : vector<1x256xf32>
    %36 = vector.extract_strided_slice %3 {offsets = [1, 0, 0], sizes = [1, 8, 1], strides = [1, 1, 1]} : vector<9x8x1xf32> to vector<1x8x1xf32>
    %37 = vector.shape_cast %36 : vector<1x8x1xf32> to vector<8x1xf32>
    %38 = vector.shape_cast %35 : vector<1x256xi1> to vector<1x256xi1>
    %39 = vector.broadcast %38 : vector<1x256xi1> to vector<8x256xi1>
    %40 = vector.shape_cast %37 : vector<8x1xf32> to vector<8x1xf32>
    %41 = vector.broadcast %40 : vector<8x1xf32> to vector<8x256xf32>
    %42 = arith.select %39, %32, %41 : vector<8x256xi1>, vector<8x256xf32>
    %43 = arith.addf %12, %42 : vector<8x256xf32>
    %44 = vector.extract_strided_slice %10 {offsets = [16, 0], sizes = [8, 256], strides = [1, 1]} : vector<72x256xf32> to vector<8x256xf32>
    %45 = vector.extract_strided_slice %44 {offsets = [0, 241], sizes = [8, 15], strides = [1, 1]} : vector<8x256xf32> to vector<8x15xf32>
    %46 = vector.extract_strided_slice %44 {offsets = [0, 0], sizes = [8, 241], strides = [1, 1]} : vector<8x256xf32> to vector<8x241xf32>
    %47 = tpu.concatenate %45, %46 in 1 : vector<8x15xf32>, vector<8x241xf32> -> vector<8x256xf32>
    %c2 = arith.constant 2 : index
    %c0_19 = arith.constant 0 : index
    %48 = vector.load %arg6[%c2, %c0_19] : memref<9x256xf32, #tpu.memory_space<vmem>>, vector<1x256xf32>
    %cst_20 = arith.constant 5.000000e-01 : f32
    %49 = vector.broadcast %cst_20 : f32 to vector<1x256xf32>
    %50 = arith.cmpf ogt, %48, %49 : vector<1x256xf32>
    %51 = vector.extract_strided_slice %3 {offsets = [2, 0, 0], sizes = [1, 8, 1], strides = [1, 1, 1]} : vector<9x8x1xf32> to vector<1x8x1xf32>
    %52 = vector.shape_cast %51 : vector<1x8x1xf32> to vector<8x1xf32>
    %53 = vector.shape_cast %50 : vector<1x256xi1> to vector<1x256xi1>
    %54 = vector.broadcast %53 : vector<1x256xi1> to vector<8x256xi1>
    %55 = vector.shape_cast %52 : vector<8x1xf32> to vector<8x1xf32>
    %56 = vector.broadcast %55 : vector<8x1xf32> to vector<8x256xf32>
    %57 = arith.select %54, %47, %56 : vector<8x256xi1>, vector<8x256xf32>
    %58 = arith.addf %13, %57 : vector<8x256xf32>
    %59 = vector.extract_strided_slice %10 {offsets = [24, 0], sizes = [8, 256], strides = [1, 1]} : vector<72x256xf32> to vector<8x256xf32>
    %60 = vector.extract_strided_slice %59 {offsets = [0, 255], sizes = [8, 1], strides = [1, 1]} : vector<8x256xf32> to vector<8x1xf32>
    %61 = vector.extract_strided_slice %59 {offsets = [0, 0], sizes = [8, 255], strides = [1, 1]} : vector<8x256xf32> to vector<8x255xf32>
    %62 = tpu.concatenate %60, %61 in 1 : vector<8x1xf32>, vector<8x255xf32> -> vector<8x256xf32>
    %c3 = arith.constant 3 : index
    %c0_21 = arith.constant 0 : index
    %63 = vector.load %arg6[%c3, %c0_21] : memref<9x256xf32, #tpu.memory_space<vmem>>, vector<1x256xf32>
    %cst_22 = arith.constant 5.000000e-01 : f32
    %64 = vector.broadcast %cst_22 : f32 to vector<1x256xf32>
    %65 = arith.cmpf ogt, %63, %64 : vector<1x256xf32>
    %66 = vector.extract_strided_slice %3 {offsets = [3, 0, 0], sizes = [1, 8, 1], strides = [1, 1, 1]} : vector<9x8x1xf32> to vector<1x8x1xf32>
    %67 = vector.shape_cast %66 : vector<1x8x1xf32> to vector<8x1xf32>
    %68 = vector.shape_cast %65 : vector<1x256xi1> to vector<1x256xi1>
    %69 = vector.broadcast %68 : vector<1x256xi1> to vector<8x256xi1>
    %70 = vector.shape_cast %67 : vector<8x1xf32> to vector<8x1xf32>
    %71 = vector.broadcast %70 : vector<8x1xf32> to vector<8x256xf32>
    %72 = arith.select %69, %62, %71 : vector<8x256xi1>, vector<8x256xf32>
    %73 = arith.addf %28, %72 : vector<8x256xf32>
    %74 = vector.extract_strided_slice %10 {offsets = [32, 0], sizes = [8, 256], strides = [1, 1]} : vector<72x256xf32> to vector<8x256xf32>
    %75 = arith.addf %43, %74 : vector<8x256xf32>
    %76 = vector.extract_strided_slice %10 {offsets = [40, 0], sizes = [8, 256], strides = [1, 1]} : vector<72x256xf32> to vector<8x256xf32>
    %77 = vector.extract_strided_slice %76 {offsets = [0, 1], sizes = [8, 255], strides = [1, 1]} : vector<8x256xf32> to vector<8x255xf32>
    %78 = vector.extract_strided_slice %76 {offsets = [0, 0], sizes = [8, 1], strides = [1, 1]} : vector<8x256xf32> to vector<8x1xf32>
    %79 = tpu.concatenate %77, %78 in 1 : vector<8x255xf32>, vector<8x1xf32> -> vector<8x256xf32>
    %c5 = arith.constant 5 : index
    %c0_23 = arith.constant 0 : index
    %80 = vector.load %arg6[%c5, %c0_23] : memref<9x256xf32, #tpu.memory_space<vmem>>, vector<1x256xf32>
    %cst_24 = arith.constant 5.000000e-01 : f32
    %81 = vector.broadcast %cst_24 : f32 to vector<1x256xf32>
    %82 = arith.cmpf ogt, %80, %81 : vector<1x256xf32>
    %83 = vector.extract_strided_slice %3 {offsets = [5, 0, 0], sizes = [1, 8, 1], strides = [1, 1, 1]} : vector<9x8x1xf32> to vector<1x8x1xf32>
    %84 = vector.shape_cast %83 : vector<1x8x1xf32> to vector<8x1xf32>
    %85 = vector.shape_cast %82 : vector<1x256xi1> to vector<1x256xi1>
    %86 = vector.broadcast %85 : vector<1x256xi1> to vector<8x256xi1>
    %87 = vector.shape_cast %84 : vector<8x1xf32> to vector<8x1xf32>
    %88 = vector.broadcast %87 : vector<8x1xf32> to vector<8x256xf32>
    %89 = arith.select %86, %79, %88 : vector<8x256xi1>, vector<8x256xf32>
    %90 = arith.addf %58, %89 : vector<8x256xf32>
    %91 = vector.extract_strided_slice %10 {offsets = [48, 0], sizes = [8, 256], strides = [1, 1]} : vector<72x256xf32> to vector<8x256xf32>
    %92 = vector.extract_strided_slice %91 {offsets = [0, 15], sizes = [8, 241], strides = [1, 1]} : vector<8x256xf32> to vector<8x241xf32>
    %93 = vector.extract_strided_slice %91 {offsets = [0, 0], sizes = [8, 15], strides = [1, 1]} : vector<8x256xf32> to vector<8x15xf32>
    %94 = tpu.concatenate %92, %93 in 1 : vector<8x241xf32>, vector<8x15xf32> -> vector<8x256xf32>
    %c6 = arith.constant 6 : index
    %c0_25 = arith.constant 0 : index
    %95 = vector.load %arg6[%c6, %c0_25] : memref<9x256xf32, #tpu.memory_space<vmem>>, vector<1x256xf32>
    %cst_26 = arith.constant 5.000000e-01 : f32
    %96 = vector.broadcast %cst_26 : f32 to vector<1x256xf32>
    %97 = arith.cmpf ogt, %95, %96 : vector<1x256xf32>
    %98 = vector.extract_strided_slice %3 {offsets = [6, 0, 0], sizes = [1, 8, 1], strides = [1, 1, 1]} : vector<9x8x1xf32> to vector<1x8x1xf32>
    %99 = vector.shape_cast %98 : vector<1x8x1xf32> to vector<8x1xf32>
    %100 = vector.shape_cast %97 : vector<1x256xi1> to vector<1x256xi1>
    %101 = vector.broadcast %100 : vector<1x256xi1> to vector<8x256xi1>
    %102 = vector.shape_cast %99 : vector<8x1xf32> to vector<8x1xf32>
    %103 = vector.broadcast %102 : vector<8x1xf32> to vector<8x256xf32>
    %104 = arith.select %101, %94, %103 : vector<8x256xi1>, vector<8x256xf32>
    %105 = arith.addf %73, %104 : vector<8x256xf32>
    %106 = vector.extract_strided_slice %10 {offsets = [56, 0], sizes = [8, 256], strides = [1, 1]} : vector<72x256xf32> to vector<8x256xf32>
    %107 = vector.extract_strided_slice %106 {offsets = [0, 16], sizes = [8, 240], strides = [1, 1]} : vector<8x256xf32> to vector<8x240xf32>
    %108 = vector.extract_strided_slice %106 {offsets = [0, 0], sizes = [8, 16], strides = [1, 1]} : vector<8x256xf32> to vector<8x16xf32>
    %109 = tpu.concatenate %107, %108 in 1 : vector<8x240xf32>, vector<8x16xf32> -> vector<8x256xf32>
    %c7 = arith.constant 7 : index
    %c0_27 = arith.constant 0 : index
    %110 = vector.load %arg6[%c7, %c0_27] : memref<9x256xf32, #tpu.memory_space<vmem>>, vector<1x256xf32>
    %cst_28 = arith.constant 5.000000e-01 : f32
    %111 = vector.broadcast %cst_28 : f32 to vector<1x256xf32>
    %112 = arith.cmpf ogt, %110, %111 : vector<1x256xf32>
    %113 = vector.extract_strided_slice %3 {offsets = [7, 0, 0], sizes = [1, 8, 1], strides = [1, 1, 1]} : vector<9x8x1xf32> to vector<1x8x1xf32>
    %114 = vector.shape_cast %113 : vector<1x8x1xf32> to vector<8x1xf32>
    %115 = vector.shape_cast %112 : vector<1x256xi1> to vector<1x256xi1>
    %116 = vector.broadcast %115 : vector<1x256xi1> to vector<8x256xi1>
    %117 = vector.shape_cast %114 : vector<8x1xf32> to vector<8x1xf32>
    %118 = vector.broadcast %117 : vector<8x1xf32> to vector<8x256xf32>
    %119 = arith.select %116, %109, %118 : vector<8x256xi1>, vector<8x256xf32>
    %120 = arith.addf %75, %119 : vector<8x256xf32>
    %121 = vector.extract_strided_slice %10 {offsets = [64, 0], sizes = [8, 256], strides = [1, 1]} : vector<72x256xf32> to vector<8x256xf32>
    %122 = vector.extract_strided_slice %121 {offsets = [0, 17], sizes = [8, 239], strides = [1, 1]} : vector<8x256xf32> to vector<8x239xf32>
    %123 = vector.extract_strided_slice %121 {offsets = [0, 0], sizes = [8, 17], strides = [1, 1]} : vector<8x256xf32> to vector<8x17xf32>
    %124 = tpu.concatenate %122, %123 in 1 : vector<8x239xf32>, vector<8x17xf32> -> vector<8x256xf32>
    %c8 = arith.constant 8 : index
    %c0_29 = arith.constant 0 : index
    %125 = vector.load %arg6[%c8, %c0_29] : memref<9x256xf32, #tpu.memory_space<vmem>>, vector<1x256xf32>
    %cst_30 = arith.constant 5.000000e-01 : f32
    %126 = vector.broadcast %cst_30 : f32 to vector<1x256xf32>
    %127 = arith.cmpf ogt, %125, %126 : vector<1x256xf32>
    %128 = vector.extract_strided_slice %3 {offsets = [8, 0, 0], sizes = [1, 8, 1], strides = [1, 1, 1]} : vector<9x8x1xf32> to vector<1x8x1xf32>
    %129 = vector.shape_cast %128 : vector<1x8x1xf32> to vector<8x1xf32>
    %130 = vector.shape_cast %127 : vector<1x256xi1> to vector<1x256xi1>
    %131 = vector.broadcast %130 : vector<1x256xi1> to vector<8x256xi1>
    %132 = vector.shape_cast %129 : vector<8x1xf32> to vector<8x1xf32>
    %133 = vector.broadcast %132 : vector<8x1xf32> to vector<8x256xf32>
    %134 = arith.select %131, %124, %133 : vector<8x256xi1>, vector<8x256xf32>
    %135 = arith.addf %90, %134 : vector<8x256xf32>
    %136 = arith.addf %105, %120 : vector<8x256xf32>
    %137 = arith.addf %136, %135 : vector<8x256xf32>
    %c0_31 = arith.constant 0 : index
    %c0_32 = arith.constant 0 : index
    %c0_33 = arith.constant 0 : index
    %138 = vector.load %arg7[%c0_31, %c0_32, %c0_33] : memref<1x8x256xf32, #tpu.memory_space<vmem>>, vector<1x8x256xf32>
    %139 = vector.shape_cast %138 : vector<1x8x256xf32> to vector<8x256xf32>
    %140 = vector.shape_cast %137 : vector<8x256xf32> to vector<1x8x256xf32>
    tpu.vector_store %arg7[%c0_31, %c0_32, %c0_33], %140 {strides = array<i32>} : memref<1x8x256xf32, #tpu.memory_space<vmem>>, vector<1x8x256xf32>,
    return
  }
  func.func @transform_0(%arg0: i32) -> (i32, i32, i32) {
    %c0_i32 = arith.constant 0 : i32
    %c0_i32_0 = arith.constant 0 : i32
    %c0_i32_1 = arith.constant 0 : i32
    return %arg0, %c0_i32, %c0_i32_0 : i32, i32, i32
  }
  func.func @transform_1(%arg0: i32) -> (i32, i32) {
    %c0_i32 = arith.constant 0 : i32
    %c0_i32_0 = arith.constant 0 : i32
    %c0_i32_1 = arith.constant 0 : i32
    return %c0_i32, %c0_i32_0 : i32, i32
  }
  func.func @transform_2(%arg0: i32) -> (i32, i32) {
    %c0_i32 = arith.constant 0 : i32
    %c0_i32_0 = arith.constant 0 : i32
    %c0_i32_1 = arith.constant 0 : i32
    return %c0_i32, %c0_i32_0 : i32, i32
  }
  func.func @transform_3(%arg0: i32) -> (i32, i32) {
    %c0_i32 = arith.constant 0 : i32
    %c0_i32_0 = arith.constant 0 : i32
    %c0_i32_1 = arith.constant 0 : i32
    return %c0_i32, %c0_i32_0 : i32, i32
  }
  func.func @transform_4(%arg0: i32) -> (i32, i32, i32) {
    %c0_i32 = arith.constant 0 : i32
    %c0_i32_0 = arith.constant 0 : i32
    %c0_i32_1 = arith.constant 0 : i32
    %c0_i32_2 = arith.constant 0 : i32
    return %c0_i32, %c0_i32_0, %c0_i32_1 : i32, i32, i32
  }
  func.func @transform_5(%arg0: i32) -> (i32, i32) {
    %c0_i32 = arith.constant 0 : i32
    %c0_i32_0 = arith.constant 0 : i32
    %c0_i32_1 = arith.constant 0 : i32
    return %c0_i32, %c0_i32_0 : i32, i32
  }
  func.func @transform_6(%arg0: i32) -> (i32, i32, i32) {
    %c0_i32 = arith.constant 0 : i32
    %c0_i32_0 = arith.constant 0 : i32
    %c0_i32_1 = arith.constant 0 : i32
    return %arg0, %c0_i32, %c0_i32_0 : i32, i32, i32
  }
}

</mosaic_0001>

<llo_original>
// kernel: _lambda_.1
$region0: #{_lambda_.1}
  #allocation0 [shape = 'u32[]', space=smem, size = 0x4, offset = 0x4, fixed_abs, tag = 'smem constant byte address 0x4 - core index']
  #allocation1 [shape = 'u32[144,128]{1,0:T(1,128)}', space=vmem, size = 0x12000, scoped, tag = 'internal scratch']
  %s0 = inlined_call_operand.vmem [shape: f32[2,4,256], index: 0, kind: input, shape index: {}]
  %s1 = inlined_call_operand.vmem [shape: f32[24,4], index: 1, kind: input, shape index: {}]
  %s2 = inlined_call_operand.vmem [shape: f32[24,1], index: 2, kind: input, shape index: {}]
  %s3 = inlined_call_operand.vmem [shape: f32[72,16], index: 3, kind: input, shape index: {}]
  %s4 = inlined_call_operand.vmem [shape: f32[9,8,1], index: 4, kind: input, shape index: {}]
  %s5 = inlined_call_operand.vmem [shape: f32[9,256], index: 5, kind: input, shape index: {}]
  %s6 = inlined_call_operand.vmem [shape: f32[2,8,256], index: 6, kind: output, shape index: {}]
  %s7 = sld [smem:[#allocation0]]
  $region57: #{_lambda_.1} parent=0
    _
  %s9 = ssub.s32 1, %s7
  %s10 = scalar_select 0, %s9, %s7
  loop: start=0, step=1, limit=4
  $region2: #{_lambda_.1} parent=0 // loop_pre_header
    _
  $region3: #{_lambda_.1} parent=0 // loop_header
    %s12 = sphi 0, %s16
    %p13 = scmp.ge.s32.totalorder %s12, 4
    %s22 = sphi 0, %s24
    %s25 = sphi 0, %s22
    %s26 = sphi 0, %s25
    %s42 = sphi 0, %s26
    %s46 = sphi 0, %s46
    %s48 = sphi 0, %s46
    %s49 = sphi 0, %s48
    %s63 = sphi 0, %s49
    %s67 = sphi 0, %s67
    %s69 = sphi 0, %s67
    %s70 = sphi 0, %s69
    %s84 = sphi 0, %s70
    %s88 = sphi 0, %s88
    %s90 = sphi 0, %s88
    %s91 = sphi 0, %s90
    %s105 = sphi 0, %s91
    %s109 = sphi 0, %s109
    %s111 = sphi 0, %s109
    %s112 = sphi 0, %s111
    %s126 = sphi 0, %s112
    %s130 = sphi 0, %s130
    %s132 = sphi 0, %s130
    %s133 = sphi 0, %s132
    %s147 = sphi 0, %s133
    %s153 = sphi 0, %s155
    %s156 = sphi 0, %s153
    %s157 = sphi 0, %s156
    %s173 = sphi 0, %s157
  $region4: #{_lambda_.1} parent=0 // loop_header_branch
    %15 = sbr.rel (%p13) target = $region8
  $region5: #{_lambda_.1} parent=0 // loop_body
    %s17 = ssub.s32 %s12, 1
    %s18 = ssub.s32 %s12, 2
    %s19 = sadd.s32 %s12, 1
    %s20 = ssub.s32 %s12, %s19
    %p21 = scmp.eq.s32.totalorder %s20, 0
    %s23 = sadd.s32 %s22, 1
    %s24 = scalar_select %p21, %s22, %s23
    %p27 = pneg %p21
    %p28 = scmp.eq.s32.totalorder %s12, 1
    %p29 = por %p27, %p28
    %p30 = scmp.ne.s32.totalorder %s22, %s25
    %p31 = scmp.eq.s32.totalorder %s12, 0
    %p32 = por %p30, %p31
    %p33 = scmp.ne.s32.totalorder %s22, %s25
    %p34 = scmp.eq.s32.totalorder %s17, 1
    %p35 = por %p33, %p34
    %p36 = scmp.ne.s32.totalorder %s25, %s26
    %p37 = scmp.eq.s32.totalorder %s17, 0
    %p38 = por %p36, %p37
    %p39 = scmp.ne.s32.totalorder %s25, %s26
    %p40 = scmp.eq.s32.totalorder %s18, 1
    %p41 = por %p39, %p40
    %p43 = scmp.ne.s32.totalorder %s26, %s42
    %p44 = scmp.eq.s32.totalorder %s18, 0
    %p45 = por %p43, %p44
    %s47 = sadd.s32 %s46, 1
    %p50 = scmp.eq.s32.totalorder %s12, 1
    %p51 = scmp.ne.s32.totalorder %s46, %s48
    %p52 = scmp.eq.s32.totalorder %s12, 0
    %p53 = por %p51, %p52
    %p54 = scmp.ne.s32.totalorder %s46, %s48
    %p55 = scmp.eq.s32.totalorder %s17, 1
    %p56 = por %p54, %p55
    %p57 = scmp.ne.s32.totalorder %s48, %s49
    %p58 = scmp.eq.s32.totalorder %s17, 0
    %p59 = por %p57, %p58
    %p60 = scmp.ne.s32.totalorder %s48, %s49
    %p61 = scmp.eq.s32.totalorder %s18, 1
    %p62 = por %p60, %p61
    %p64 = scmp.ne.s32.totalorder %s49, %s63
    %p65 = scmp.eq.s32.totalorder %s18, 0
    %p66 = por %p64, %p65
    %s68 = sadd.s32 %s67, 1
    %p71 = scmp.eq.s32.totalorder %s12, 1
    %p72 = scmp.ne.s32.totalorder %s67, %s69
    %p73 = scmp.eq.s32.totalorder %s12, 0
    %p74 = por %p72, %p73
    %p75 = scmp.ne.s32.totalorder %s67, %s69
    %p76 = scmp.eq.s32.totalorder %s17, 1
    %p77 = por %p75, %p76
    %p78 = scmp.ne.s32.totalorder %s69, %s70
    %p79 = scmp.eq.s32.totalorder %s17, 0
    %p80 = por %p78, %p79
    %p81 = scmp.ne.s32.totalorder %s69, %s70
    %p82 = scmp.eq.s32.totalorder %s18, 1
    %p83 = por %p81, %p82
    %p85 = scmp.ne.s32.totalorder %s70, %s84
    %p86 = scmp.eq.s32.totalorder %s18, 0
    %p87 = por %p85, %p86
    %s89 = sadd.s32 %s88, 1
    %p92 = scmp.eq.s32.totalorder %s12, 1
    %p93 = scmp.ne.s32.totalorder %s88, %s90
    %p94 = scmp.eq.s32.totalorder %s12, 0
    %p95 = por %p93, %p94
    %p96 = scmp.ne.s32.totalorder %s88, %s90
    %p97 = scmp.eq.s32.totalorder %s17, 1
    %p98 = por %p96, %p97
    %p99 = scmp.ne.s32.totalorder %s90, %s91
    %p100 = scmp.eq.s32.totalorder %s17, 0
    %p101 = por %p99, %p100
    %p102 = scmp.ne.s32.totalorder %s90, %s91
    %p103 = scmp.eq.s32.totalorder %s18, 1
    %p104 = por %p102, %p103
    %p106 = scmp.ne.s32.totalorder %s91, %s105
    %p107 = scmp.eq.s32.totalorder %s18, 0
    %p108 = por %p106, %p107
    %s110 = sadd.s32 %s109, 1
    %p113 = scmp.eq.s32.totalorder %s12, 1
    %p114 = scmp.ne.s32.totalorder %s109, %s111
    %p115 = scmp.eq.s32.totalorder %s12, 0
    %p116 = por %p114, %p115
    %p117 = scmp.ne.s32.totalorder %s109, %s111
    %p118 = scmp.eq.s32.totalorder %s17, 1
    %p119 = por %p117, %p118
    %p120 = scmp.ne.s32.totalorder %s111, %s112
    %p121 = scmp.eq.s32.totalorder %s17, 0
    %p122 = por %p120, %p121
    %p123 = scmp.ne.s32.totalorder %s111, %s112
    %p124 = scmp.eq.s32.totalorder %s18, 1
    %p125 = por %p123, %p124
    %p127 = scmp.ne.s32.totalorder %s112, %s126
    %p128 = scmp.eq.s32.totalorder %s18, 0
    %p129 = por %p127, %p128
    %s131 = sadd.s32 %s130, 1
    %p134 = scmp.eq.s32.totalorder %s12, 1
    %p135 = scmp.ne.s32.totalorder %s130, %s132
    %p136 = scmp.eq.s32.totalorder %s12, 0
    %p137 = por %p135, %p136
    %p138 = scmp.ne.s32.totalorder %s130, %s132
    %p139 = scmp.eq.s32.totalorder %s17, 1
    %p140 = por %p138, %p139
    %p141 = scmp.ne.s32.totalorder %s132, %s133
    %p142 = scmp.eq.s32.totalorder %s17, 0
    %p143 = por %p141, %p142
    %p144 = scmp.ne.s32.totalorder %s132, %s133
    %p145 = scmp.eq.s32.totalorder %s18, 1
    %p146 = por %p144, %p145
    %p148 = scmp.ne.s32.totalorder %s133, %s147
    %p149 = scmp.eq.s32.totalorder %s18, 0
    %p150 = por %p148, %p149
    %s151 = ssub.s32 %s12, %s19
    %p152 = scmp.eq.s32.totalorder %s151, 0
    %s154 = sadd.s32 %s153, 1
    %s155 = scalar_select %p152, %s153, %s154
    %p158 = pneg %p152
    %p159 = scmp.eq.s32.totalorder %s12, 1
    %p160 = por %p158, %p159
    %p161 = scmp.ne.s32.totalorder %s153, %s156
    %p162 = scmp.eq.s32.totalorder %s12, 0
    %p163 = por %p161, %p162
    %p164 = scmp.ne.s32.totalorder %s153, %s156
    %p165 = scmp.eq.s32.totalorder %s17, 1
    %p166 = por %p164, %p165
    %p167 = scmp.ne.s32.totalorder %s156, %s157
    %p168 = scmp.eq.s32.totalorder %s17, 0
    %p169 = por %p167, %p168
    %p170 = scmp.ne.s32.totalorder %s156, %s157
    %p171 = scmp.eq.s32.totalorder %s18, 1
    %p172 = por %p170, %p171
    %p174 = scmp.ne.s32.totalorder %s157, %s173
    %p175 = scmp.eq.s32.totalorder %s18, 0
    %p176 = por %p174, %p175
    %p177 = scmp.le.s32.totalorder 1, %s12
    %p178 = scmp.lt.s32.totalorder %s12, 3
    %p179 = pnand %p177, %p178
    %p180 = pneg %p179
    // Predicated region
    $region9: #{_lambda_.1} parent=5 // pred_check
      _
    $region10: #{_lambda_.1} parent=5 // pred_check_branch
      %182 = sbr.rel (%p179) target = $region12
    $region11: #{_lambda_.1} parent=5 // pred_region
      %s183 = ssub.s32 %s12, 1
      // Predicated region
      $region13: #{_lambda_.1} parent=11 // pred_check
        %p184 = pneg %p59
      $region14: #{_lambda_.1} parent=11 // pred_check_branch
        %186 = sbr.rel (%p184) target = $region16
      $region15: #{_lambda_.1} parent=11 // pred_region
        _
      $region16: #{_lambda_.1} parent=11 // pred_fallthru
        _
      // Predicated region
      $region17: #{_lambda_.1} parent=11 // pred_check
        %p187 = pneg %p80
      $region18: #{_lambda_.1} parent=11 // pred_check_branch
        %189 = sbr.rel (%p187) target = $region20
      $region19: #{_lambda_.1} parent=11 // pred_region
        _
      $region20: #{_lambda_.1} parent=11 // pred_fallthru
        _
      // Predicated region
      $region21: #{_lambda_.1} parent=11 // pred_check
        %p190 = pneg %p101
      $region22: #{_lambda_.1} parent=11 // pred_check_branch
        %192 = sbr.rel (%p190) target = $region24
      $region23: #{_lambda_.1} parent=11 // pred_region
        _
      $region24: #{_lambda_.1} parent=11 // pred_fallthru
        _
      // Predicated region
      $region25: #{_lambda_.1} parent=11 // pred_check
        %p193 = pneg %p122
      $region26: #{_lambda_.1} parent=11 // pred_check_branch
        %195 = sbr.rel (%p193) target = $region28
      $region27: #{_lambda_.1} parent=11 // pred_region
        _
      $region28: #{_lambda_.1} parent=11 // pred_fallthru
        _
      // Predicated region
      $region29: #{_lambda_.1} parent=11 // pred_check
        %p196 = pneg %p143
      $region30: #{_lambda_.1} parent=11 // pred_check_branch
        %198 = sbr.rel (%p196) target = $region32
      $region31: #{_lambda_.1} parent=11 // pred_region
        _
      $region32: #{_lambda_.1} parent=11 // pred_fallthru
        _
    $region12: #{_lambda_.1} parent=5 // pred_fallthru
      _
    %p199 = scmp.lt.s32.totalorder %s12, 2
    // Predicated region
    $region33: #{_lambda_.1} parent=5 // pred_check
      %p200 = pneg %p199
    $region34: #{_lambda_.1} parent=5 // pred_check_branch
      %202 = sbr.rel (%p200) target = $region36
    $region35: #{_lambda_.1} parent=5 // pred_region
      // Predicated region
      $region37: #{_lambda_.1} parent=35 // pred_check
        %p203 = pneg %p32
      $region38: #{_lambda_.1} parent=35 // pred_check_branch
        %205 = sbr.rel (%p203) target = $region40
      $region39: #{_lambda_.1} parent=35 // pred_region
        %p206 = scmp.lt.s32.totalorder %s12, 1
        %s207 = scalar_select %p206, %s12, 1
        %s208 = smul.addr %s207, 2
        %s209 = smul.addr %s208, 4
        %s210 = scalar_lea.vmem %s0, %s209
      $region40: #{_lambda_.1} parent=35 // pred_fallthru
        _
    $region36: #{_lambda_.1} parent=5 // pred_fallthru
      _
    %p211 = scmp.le.s32.totalorder 1, %s12
    %p212 = scmp.lt.s32.totalorder %s12, 3
    %p213 = pnand %p211, %p212
    %p214 = pneg %p213
    // Predicated region
    $region41: #{_lambda_.1} parent=5 // pred_check
      _
    $region42: #{_lambda_.1} parent=5 // pred_check_branch
      %216 = sbr.rel (%p213) target = $region44
    $region43: #{_lambda_.1} parent=5 // pred_region
      %s217 = ssub.s32 %s12, 1
      %p218 = scmp.lt.s32.totalorder %s17, 1
      %s219 = scalar_select %p218, %s17, 1
      %s220 = smul.addr %s219, 2
      %s221 = smul.addr %s220, 4
      %s222 = scalar_lea.vmem %s0, %s221
      %p223 = pneg %p38
      %p224 = pneg %p35
      %p225 = pneg %p59
      %p226 = pneg %p56
      %p227 = pneg %p80
      %p228 = pneg %p77
      %p229 = pneg %p101
      %p230 = pneg %p98
      %p231 = pneg %p122
      %p232 = pneg %p119
      %p233 = pneg %p143
      %p234 = pneg %p140
      %p235 = pneg %p169
      %p236 = pneg %p166
      %p237 = scmp.lt.s32.totalorder %s17, 1
      %s238 = scalar_select %p237, %s17, 1
      %s239 = smul.addr %s238, 2
      %s240 = smul.addr %s239, 8
      %s241 = scalar_lea.vmem %s6, %s240
      %p242 = scmp.lt.s32.totalorder %s17, 1
      %s243 = scalar_select %p242, %s17, 1
      %s244 = smul.addr %s243, 2
      %s245 = smul.addr %s244, 4
      %s246 = scalar_lea.vmem %s0, %s245
      %p247 = scmp.lt.s32.totalorder %s17, 1
      %s248 = scalar_select %p247, %s17, 1
      %s249 = smul.addr %s248, 2
      %s250 = smul.addr %s249, 8
      %s251 = scalar_lea.vmem %s6, %s250
      %v252 = vld [vmem:[%s1] sm:$0xff]
      %v253 = vld [vmem:[%s1 + $0x8] sm:$0xff]
      %v254 = vld [vmem:[%s1 + $0x10] sm:$0xff]
      %v255 = vld [vmem:[%s2] sm:$0xff]
      %v256 = vld [vmem:[%s2 + $0x8] sm:$0xff]
      %v257 = vld [vmem:[%s2 + $0x10] sm:$0xff]
      %v258 = vld [vmem:[%s3] sm:$0xff]
      %v259 = vld [vmem:[%s3 + $0x8] sm:$0xff]
      %v260 = vld [vmem:[%s3 + $0x10] sm:$0xff]
      %v261 = vld [vmem:[%s3 + $0x18] sm:$0xff]
      %v262 = vld [vmem:[%s3 + $0x20] sm:$0xff]
      %v263 = vld [vmem:[%s3 + $0x28] sm:$0xff]
      %v264 = vld [vmem:[%s3 + $0x30] sm:$0xff]
      %v265 = vld [vmem:[%s3 + $0x38] sm:$0xff]
      %v266 = vld [vmem:[%s3 + $0x40] sm:$0xff]
      %v267 = vld [vmem:[%s4] sm:$0xff]
      %v268 = vld [vmem:[%s4 + $0x8] sm:$0xff]
      %v269 = vld [vmem:[%s4 + $0x10] sm:$0xff]
      %v270 = vld [vmem:[%s4 + $0x18] sm:$0xff]
      %v271 = vld [vmem:[%s4 + $0x28] sm:$0xff]
      %v272 = vld [vmem:[%s4 + $0x30] sm:$0xff]
      %v273 = vld [vmem:[%s4 + $0x38] sm:$0xff]
      %v274 = vld [vmem:[%s4 + $0x40] sm:$0xff]
      %v275 = vld [vmem:[%s246] sm:$0xff]
      %277 = vset.pattern.permute.xlu0 0
      %278 = vperm.xlu0 %277, %v255
      %v279 = vpop.permute.xlu0 %278
      %282 = vset.pattern.permute.xlu0 0
      %283 = vperm.xlu0 %282, %v256
      %v284 = vpop.permute.xlu0 %283
      %287 = vset.pattern.permute.xlu0 0
      %288 = vperm.xlu0 %287, %v257
      %v289 = vpop.permute.xlu0 %288
      %v292 = vcombine.high %v275, %v275
      %vm293 = vcmask 31744
      %v295 = vsel %vm293, %v252, 0
      %v298 = vsel %vm293, %v253, 0
      %v301 = vsel %vm293, %v254, 0
      %vm303 = vcmask 1043456
      %v304 = vsel %vm303, %v275, 0
      %v306 = vsel %vm303, %v292, 0
      %308 = vmatprep.subr.mxu0 %v306
      %309 = vmatpush1.msra.mxu0 %v304
      %310 = vmatprep.subr.mxu0 0.0
      %311 = vmatpush1.msra.mxu0 0.0
      %312 = vmatprep.subr.mxu0 0.0
      %313 = vmatpush1.msra.mxu0 0.0
      %314 = vmatprep.subr.mxu0 0.0
      %315 = vmatpush1.msra.mxu0 0.0
      %316 = vmatprep.subr.mxu0 0.0
      %317 = vmatpush1.msra.mxu0 0.0
      %318 = vmatprep.subr.mxu0 0.0
      %319 = vmatpush1.msra.mxu0 0.0
      %320 = vmatprep.subr.mxu0 0.0
      %321 = vmatpush1.msra.mxu0 0.0
      %322 = vmatprep.subr.mxu0 0.0
      %323 = vmatpush1.msra.mxu0 0.0
      %324 = vmatprep.subr.mxu0 0.0
      %325 = vmatpush1.msra.mxu0 0.0
      %326 = vmatprep.subr.mxu0 0.0
      %327 = vmatpush1.msra.mxu0 0.0
      %328 = vmatprep.subr.mxu0 0.0
      %329 = vmatpush1.msra.mxu0 0.0
      %330 = vmatprep.subr.mxu0 0.0
      %331 = vmatpush1.msra.mxu0 0.0
      %332 = vmatprep.subr.mxu0 0.0
      %333 = vmatpush1.msra.mxu0 0.0
      %334 = vmatprep.subr.mxu0 0.0
      %335 = vmatpush1.msra.mxu0 0.0
      %336 = vmatprep.subr.mxu0 0.0
      %337 = vmatpush1.msra.mxu0 0.0
      %338 = vmatprep.subr.mxu0 0.0
      %339 = vmatpush1.msra.mxu0 0.0
      %340 = vmatprep.subr.mxu0 0.0
      %341 = vmatpush1.msra.mxu0 0.0
      %342 = vmatprep.subr.mxu0 0.0
      %343 = vmatpush1.msra.mxu0 0.0
      %344 = vmatprep.subr.mxu0 0.0
      %345 = vmatpush1.msra.mxu0 0.0
      %346 = vmatprep.subr.mxu0 0.0
      %347 = vmatpush1.msra.mxu0 0.0
      %348 = vmatprep.subr.mxu0 0.0
      %349 = vmatpush1.msra.mxu0 0.0
      %350 = vmatprep.subr.mxu0 0.0
      %351 = vmatpush1.msra.mxu0 0.0
      %352 = vmatprep.subr.mxu0 0.0
      %353 = vmatpush1.msra.mxu0 0.0
      %354 = vmatprep.subr.mxu0 0.0
      %355 = vmatpush1.msra.mxu0 0.0
      %356 = vmatprep.subr.mxu0 0.0
      %357 = vmatpush1.msra.mxu0 0.0
      %358 = vmatprep.subr.mxu0 0.0
      %359 = vmatpush1.msra.mxu0 0.0
      %360 = vmatprep.subr.mxu0 0.0
      %361 = vmatpush1.msra.mxu0 0.0
      %362 = vmatprep.subr.mxu0 0.0
      %363 = vmatpush1.msra.mxu0 0.0
      %364 = vmatprep.subr.mxu0 0.0
      %365 = vmatpush1.msra.mxu0 0.0
      %366 = vmatprep.subr.mxu0 0.0
      %367 = vmatpush1.msra.mxu0 0.0
      %368 = vmatprep.subr.mxu0 0.0
      %369 = vmatpush1.msra.mxu0 0.0
      %370 = vmatprep.subr.mxu0 0.0
      %371 = vmatpush1.msra.mxu0 0.0
      %372 = vmatprep.mubr.f32.mxu0 0.0
      %373 = vmatmul.mubr.f32.gmra.mrb[0].mxu0 %v295
      %v374 = vpop.f32.mrb[0].mxu0
      %v375 = vadd.f32 %v279, %v374
      %v376 = vpop.f32.mrb[0].mxu0
      %v377 = vadd.f32 %v279, %v376
      %378 = vmatprep.mubr.f32.mxu0 0.0
      %379 = vmatmul.mubr.f32.gmra.mrb[0].mxu0 %v298
      %v380 = vpop.f32.mrb[0].mxu0
      %v381 = vadd.f32 %v284, %v380
      %v382 = vpop.f32.mrb[0].mxu0
      %v383 = vadd.f32 %v284, %v382
      %384 = vmatprep.mubr.f32.mxu0 0.0
      %385 = vmatmul.mubr.f32.gmra.mrb[0].mxu0 %v301
      %v386 = vpop.f32.mrb[0].mxu0
      %v387 = vadd.f32 %v289, %v386
      %v388 = vpop.f32.mrb[0].mxu0
      %v389 = vadd.f32 %v289, %v388
      %390 = vdwg.mxu0
      %vm391 = vcmask 130048
      %v393 = vsel %vm391, %v258, 0
      %v396 = vsel %vm391, %v259, 0
      %v399 = vsel %vm391, %v260, 0
      %v402 = vsel %vm391, %v261, 0
      %v405 = vsel %vm391, %v262, 0
      %v408 = vsel %vm391, %v263, 0
      %v411 = vsel %vm391, %v264, 0
      %v414 = vsel %vm391, %v265, 0
      %v417 = vsel %vm391, %v266, 0
      %419 = vmatprep.subr.mxu0 %v383
      %420 = vmatpush1.msra.mxu0 %v381
      %421 = vmatprep.subr.mxu0 %v389
      %422 = vmatpush1.msra.mxu0 %v387
      %423 = vmatprep.subr.mxu0 0.0
      %424 = vmatpush1.msra.mxu0 0.0
      %425 = vmatprep.subr.mxu0 0.0
      %426 = vmatpush1.msra.mxu0 0.0
      %427 = vmatprep.subr.mxu0 0.0
      %428 = vmatpush1.msra.mxu0 0.0
      %429 = vmatprep.subr.mxu0 0.0
      %430 = vmatpush1.msra.mxu0 0.0
      %431 = vmatprep.subr.mxu0 0.0
      %432 = vmatpush1.msra.mxu0 0.0
      %433 = vmatprep.subr.mxu0 0.0
      %434 = vmatpush1.msra.mxu0 0.0
      %435 = vmatprep.subr.mxu0 0.0
      %436 = vmatpush1.msra.mxu0 0.0
      %437 = vmatprep.subr.mxu0 0.0
      %438 = vmatpush1.msra.mxu0 0.0
      %439 = vmatprep.subr.mxu0 0.0
      %440 = vmatpush1.msra.mxu0 0.0
      %441 = vmatprep.subr.mxu0 0.0
      %442 = vmatpush1.msra.mxu0 0.0
      %443 = vmatprep.subr.mxu0 0.0
      %444 = vmatpush1.msra.mxu0 0.0
      %445 = vmatprep.subr.mxu0 0.0
      %446 = vmatpush1.msra.mxu0 0.0
      %447 = vmatprep.subr.mxu0 0.0
      %448 = vmatpush1.msra.mxu0 0.0
      %449 = vmatprep.subr.mxu0 0.0
      %450 = vmatpush1.msra.mxu0 0.0
      %451 = vmatprep.subr.mxu0 0.0
      %452 = vmatpush1.msra.mxu0 0.0
      %453 = vmatprep.subr.mxu0 0.0
      %454 = vmatpush1.msra.mxu0 0.0
      %455 = vmatprep.subr.mxu0 0.0
      %456 = vmatpush1.msra.mxu0 0.0
      %457 = vmatprep.subr.mxu0 0.0
      %458 = vmatpush1.msra.mxu0 0.0
      %459 = vmatprep.subr.mxu0 0.0
      %460 = vmatpush1.msra.mxu0 0.0
      %461 = vmatprep.subr.mxu0 0.0
      %462 = vmatpush1.msra.mxu0 0.0
      %463 = vmatprep.subr.mxu0 0.0
      %464 = vmatpush1.msra.mxu0 0.0
      %465 = vmatprep.subr.mxu0 0.0
      %466 = vmatpush1.msra.mxu0 0.0
      %467 = vmatprep.subr.mxu0 0.0
      %468 = vmatpush1.msra.mxu0 0.0
      %469 = vmatprep.subr.mxu0 0.0
      %470 = vmatpush1.msra.mxu0 0.0
      %471 = vmatprep.subr.mxu0 0.0
      %472 = vmatpush1.msra.mxu0 0.0
      %473 = vmatprep.subr.mxu0 0.0
      %474 = vmatpush1.msra.mxu0 0.0
      %475 = vmatprep.subr.mxu0 0.0
      %476 = vmatpush1.msra.mxu0 0.0
      %477 = vmatprep.subr.mxu0 0.0
      %478 = vmatpush1.msra.mxu0 0.0
      %479 = vmatprep.subr.mxu0 0.0
      %480 = vmatpush1.msra.mxu0 0.0
      %481 = vmatprep.subr.mxu0 0.0
      %482 = vmatpush1.msra.mxu0 0.0
      %483 = vmatprep.mubr.f32.mxu0 0.0
      %484 = vmatmul.mubr.f32.gmra.mrb[0].mxu0 %v393
      %v485 = vpop.f32.mrb[0].mxu0
      %v486 = vadd.f32 0.0, %v485
      %v487 = vpop.f32.mrb[0].mxu0
      %v488 = vadd.f32 0.0, %v487
      %489 = vmatprep.mubr.f32.mxu0 0.0
      %490 = vmatmul.mubr.f32.gmra.mrb[0].mxu0 %v396
      %v491 = vpop.f32.mrb[0].mxu0
      %v492 = vadd.f32 0.0, %v491
      %v493 = vpop.f32.mrb[0].mxu0
      %v494 = vadd.f32 0.0, %v493
      %495 = vmatprep.mubr.f32.mxu0 0.0
      %496 = vmatmul.mubr.f32.gmra.mrb[0].mxu0 %v399
      %v497 = vpop.f32.mrb[0].mxu0
      %v498 = vadd.f32 0.0, %v497
      %v499 = vpop.f32.mrb[0].mxu0
      %v500 = vadd.f32 0.0, %v499
      %501 = vmatprep.mubr.f32.mxu0 0.0
      %502 = vmatmul.mubr.f32.gmra.mrb[0].mxu0 %v402
      %v503 = vpop.f32.mrb[0].mxu0
      %v504 = vadd.f32 0.0, %v503
      %v505 = vpop.f32.mrb[0].mxu0
      %v506 = vadd.f32 0.0, %v505
      %507 = vmatprep.mubr.f32.mxu0 0.0
      %508 = vmatmul.mubr.f32.gmra.mrb[0].mxu0 %v405
      %v509 = vpop.f32.mrb[0].mxu0
      %v510 = vadd.f32 0.0, %v509
      %v511 = vpop.f32.mrb[0].mxu0
      %v512 = vadd.f32 0.0, %v511
      %513 = vmatprep.mubr.f32.mxu0 0.0
      %514 = vmatmul.mubr.f32.gmra.mrb[0].mxu0 %v408
      %v515 = vpop.f32.mrb[0].mxu0
      %v516 = vadd.f32 0.0, %v515
      %v517 = vpop.f32.mrb[0].mxu0
      %v518 = vadd.f32 0.0, %v517
      %519 = vmatprep.mubr.f32.mxu0 0.0
      %520 = vmatmul.mubr.f32.gmra.mrb[0].mxu0 %v411
      %v521 = vpop.f32.mrb[0].mxu0
      %v522 = vadd.f32 0.0, %v521
      %v523 = vpop.f32.mrb[0].mxu0
      %v524 = vadd.f32 0.0, %v523
      %525 = vmatprep.mubr.f32.mxu0 0.0
      %526 = vmatmul.mubr.f32.gmra.mrb[0].mxu0 %v414
      %v527 = vpop.f32.mrb[0].mxu0
      %v528 = vadd.f32 0.0, %v527
      %v529 = vpop.f32.mrb[0].mxu0
      %v530 = vadd.f32 0.0, %v529
      %531 = vmatprep.mubr.f32.mxu0 0.0
      %532 = vmatmul.mubr.f32.gmra.mrb[0].mxu0 %v417
      %v533 = vpop.f32.mrb[0].mxu0
      %v534 = vadd.f32 0.0, %v533
      %v535 = vpop.f32.mrb[0].mxu0
      %v536 = vadd.f32 0.0, %v535
      %537 = vdwg.mxu0
      %539 = vrot.lane.b32.xlu0 %v488, 17
      %v540 = vpop.permute.xlu0 %539
      %543 = vrot.lane.b32.xlu0 %v486, 17
      %v544 = vpop.permute.xlu0 %543
      %vm545 = vcmask 138240
      %v546 = vsel %vm545, %v544, %v540
      %v549 = vsel %vm545, %v540, %v544
      %v550 = vld [vmem:[%s5] ss:$8 sm:$0x3]
      %vm551 = vcmp.gt.f32.partialorder %v550, 0.5
      %v552 = vsel %vm551, 1, 0
      %v553 = vlaneseq
      %v554 = vshrl.u32 %v553, 7
      %v555 = vsub.s32 0, %v554
      %v556 = vrot.slane %v552, %v555
      %v557 = vlaneseq
      %v558 = vshrl.u32 %v557, 7
      %v559 = vsub.s32 1, %v558
      %v560 = vrot.slane %v552, %v559
      %vm561 = vcmp.eq.s32.totalorder %v556, 1
      %vm562 = vcmp.eq.s32.totalorder %v560, 1
      %564 = vset.pattern.permute.xlu0 0
      %565 = vperm.xlu0 %564, %v267
      %v566 = vpop.permute.xlu0 %565
      %v568 = vsel %vm561, %v549, %v566
      %v569 = vsel %vm562, %v546, %v566
      %v570 = vadd.f32 %v375, %v568
      %v571 = vadd.f32 %v377, %v569
      %573 = vrot.lane.b32.xlu0 %v494, 16
      %v574 = vpop.permute.xlu0 %573
      %577 = vrot.lane.b32.xlu0 %v492, 16
      %v578 = vpop.permute.xlu0 %577
      %v579 = vsel %vm391, %v578, %v574
      %v582 = vsel %vm391, %v574, %v578
      %s583 = scalar_lea.vmem %s5, 1
      %v584 = vld [vmem:[%s583] ss:$8 sm:$0x3]
      %vm585 = vcmp.gt.f32.partialorder %v584, 0.5
      %v586 = vsel %vm585, 1, 0
      %v587 = vlaneseq
      %v588 = vshrl.u32 %v587, 7
      %v589 = vsub.s32 0, %v588
      %v590 = vrot.slane %v586, %v589
      %v591 = vlaneseq
      %v592 = vshrl.u32 %v591, 7
      %v593 = vsub.s32 1, %v592
      %v594 = vrot.slane %v586, %v593
      %vm595 = vcmp.eq.s32.totalorder %v590, 1
      %vm596 = vcmp.eq.s32.totalorder %v594, 1
      %598 = vset.pattern.permute.xlu0 0
      %599 = vperm.xlu0 %598, %v268
      %v600 = vpop.permute.xlu0 %599
      %v602 = vsel %vm595, %v582, %v600
      %v603 = vsel %vm596, %v579, %v600
      %v604 = vadd.f32 %v602, 0.0
      %v605 = vadd.f32 %v603, 0.0
      %607 = vrot.lane.b32.xlu0 %v500, 15
      %v608 = vpop.permute.xlu0 %607
      %611 = vrot.lane.b32.xlu0 %v498, 15
      %v612 = vpop.permute.xlu0 %611
      %vm613 = vcmask 121856
      %v614 = vsel %vm613, %v612, %v608
      %v617 = vsel %vm613, %v608, %v612
      %s618 = scalar_lea.vmem %s5, 2
      %v619 = vld [vmem:[%s618] ss:$8 sm:$0x3]
      %vm620 = vcmp.gt.f32.partialorder %v619, 0.5
      %v621 = vsel %vm620, 1, 0
      %v622 = vlaneseq
      %v623 = vshrl.u32 %v622, 7
      %v624 = vsub.s32 0, %v623
      %v625 = vrot.slane %v621, %v624
      %v626 = vlaneseq
      %v627 = vshrl.u32 %v626, 7
      %v628 = vsub.s32 1, %v627
      %v629 = vrot.slane %v621, %v628
      %vm630 = vcmp.eq.s32.totalorder %v625, 1
      %vm631 = vcmp.eq.s32.totalorder %v629, 1
      %633 = vset.pattern.permute.xlu0 0
      %634 = vperm.xlu0 %633, %v269
      %v635 = vpop.permute.xlu0 %634
      %v637 = vsel %vm630, %v617, %v635
      %v638 = vsel %vm631, %v614, %v635
      %v639 = vadd.f32 %v637, 0.0
      %v640 = vadd.f32 %v638, 0.0
      %642 = vrot.lane.b32.xlu0 %v506, 1
      %v643 = vpop.permute.xlu0 %642
      %646 = vrot.lane.b32.xlu0 %v504, 1
      %v647 = vpop.permute.xlu0 %646
      %vm648 = vcmask 7168
      %v649 = vsel %vm648, %v647, %v643
      %v652 = vsel %vm648, %v643, %v647
      %s653 = scalar_lea.vmem %s5, 3
      %v654 = vld [vmem:[%s653] ss:$8 sm:$0x3]
      %vm655 = vcmp.gt.f32.partialorder %v654, 0.5
      %v656 = vsel %vm655, 1, 0
      %v657 = vlaneseq
      %v658 = vshrl.u32 %v657, 7
      %v659 = vsub.s32 0, %v658
      %v660 = vrot.slane %v656, %v659
      %v661 = vlaneseq
      %v662 = vshrl.u32 %v661, 7
      %v663 = vsub.s32 1, %v662
      %v664 = vrot.slane %v656, %v663
      %vm665 = vcmp.eq.s32.totalorder %v660, 1
      %vm666 = vcmp.eq.s32.totalorder %v664, 1
      %668 = vset.pattern.permute.xlu0 0
      %669 = vperm.xlu0 %668, %v270
      %v670 = vpop.permute.xlu0 %669
      %v672 = vsel %vm665, %v652, %v670
      %v673 = vsel %vm666, %v649, %v670
      %v674 = vadd.f32 %v570, %v672
      %v675 = vadd.f32 %v571, %v673
      %v676 = vadd.f32 %v604, %v510
      %v677 = vadd.f32 %v605, %v512
      %680 = vrot.lane.b32.xlu0 %v516, 127
      %v681 = vpop.permute.xlu0 %680
      %682 = vrot.lane.b32.xlu0 %v518, 127
      %v683 = vpop.permute.xlu0 %682
      %vm684 = vcmask 1039360
      %v685 = vsel %vm684, %v681, %v683
      %v689 = vsel %vm684, %v683, %v681
      %s690 = scalar_lea.vmem %s5, 5
      %v691 = vld [vmem:[%s690] ss:$8 sm:$0x3]
      %vm692 = vcmp.gt.f32.partialorder %v691, 0.5
      %v693 = vsel %vm692, 1, 0
      %v694 = vlaneseq
      %v695 = vshrl.u32 %v694, 7
      %v696 = vsub.s32 0, %v695
      %v697 = vrot.slane %v693, %v696
      %v698 = vlaneseq
      %v699 = vshrl.u32 %v698, 7
      %v700 = vsub.s32 1, %v699
      %v701 = vrot.slane %v693, %v700
      %vm702 = vcmp.eq.s32.totalorder %v697, 1
      %vm703 = vcmp.eq.s32.totalorder %v701, 1
      %705 = vset.pattern.permute.xlu0 0
      %706 = vperm.xlu0 %705, %v271
      %v707 = vpop.permute.xlu0 %706
      %v709 = vsel %vm702, %v685, %v707
      %v710 = vsel %vm703, %v689, %v707
      %v711 = vadd.f32 %v639, %v709
      %v712 = vadd.f32 %v640, %v710
      %715 = vrot.lane.b32.xlu0 %v522, 113
      %v716 = vpop.permute.xlu0 %715
      %717 = vrot.lane.b32.xlu0 %v524, 113
      %v718 = vpop.permute.xlu0 %717
      %vm719 = vcmask 924672
      %v720 = vsel %vm719, %v716, %v718
      %v724 = vsel %vm719, %v718, %v716
      %s725 = scalar_lea.vmem %s5, 6
      %v726 = vld [vmem:[%s725] ss:$8 sm:$0x3]
      %vm727 = vcmp.gt.f32.partialorder %v726, 0.5
      %v728 = vsel %vm727, 1, 0
      %v729 = vlaneseq
      %v730 = vshrl.u32 %v729, 7
      %v731 = vsub.s32 0, %v730
      %v732 = vrot.slane %v728, %v731
      %v733 = vlaneseq
      %v734 = vshrl.u32 %v733, 7
      %v735 = vsub.s32 1, %v734
      %v736 = vrot.slane %v728, %v735
      %vm737 = vcmp.eq.s32.totalorder %v732, 1
      %vm738 = vcmp.eq.s32.totalorder %v736, 1
      %740 = vset.pattern.permute.xlu0 0
      %741 = vperm.xlu0 %740, %v272
      %v742 = vpop.permute.xlu0 %741
      %v744 = vsel %vm737, %v720, %v742
      %v745 = vsel %vm738, %v724, %v742
      %v746 = vadd.f32 %v674, %v744
      %v747 = vadd.f32 %v675, %v745
      %750 = vrot.lane.b32.xlu0 %v528, 112
      %v751 = vpop.permute.xlu0 %750
      %752 = vrot.lane.b32.xlu0 %v530, 112
      %v753 = vpop.permute.xlu0 %752
      %vm754 = vcmask 916480
      %v755 = vsel %vm754, %v751, %v753
      %v759 = vsel %vm754, %v753, %v751
      %s760 = scalar_lea.vmem %s5, 7
      %v761 = vld [vmem:[%s760] ss:$8 sm:$0x3]
      %vm762 = vcmp.gt.f32.partialorder %v761, 0.5
      %v763 = vsel %vm762, 1, 0
      %v764 = vlaneseq
      %v765 = vshrl.u32 %v764, 7
      %v766 = vsub.s32 0, %v765
      %v767 = vrot.slane %v763, %v766
      %v768 = vlaneseq
      %v769 = vshrl.u32 %v768, 7
      %v770 = vsub.s32 1, %v769
      %v771 = vrot.slane %v763, %v770
      %vm772 = vcmp.eq.s32.totalorder %v767, 1
      %vm773 = vcmp.eq.s32.totalorder %v771, 1
      %775 = vset.pattern.permute.xlu0 0
      %776 = vperm.xlu0 %775, %v273
      %v777 = vpop.permute.xlu0 %776
      %v779 = vsel %vm772, %v755, %v777
      %v780 = vsel %vm773, %v759, %v777
      %v781 = vadd.f32 %v676, %v779
      %v782 = vadd.f32 %v677, %v780
      %785 = vrot.lane.b32.xlu0 %v534, 111
      %v786 = vpop.permute.xlu0 %785
      %787 = vrot.lane.b32.xlu0 %v536, 111
      %v788 = vpop.permute.xlu0 %787
      %vm789 = vcmask 908288
      %v790 = vsel %vm789, %v786, %v788
      %v794 = vsel %vm789, %v788, %v786
      %s795 = scalar_lea.vmem %s5, 16
      %v796 = vld [vmem:[%s795] ss:$8 sm:$0x3]
      %vm797 = vcmp.gt.f32.partialorder %v796, 0.5
      %v798 = vsel %vm797, 1, 0
      %v799 = vlaneseq
      %v800 = vshrl.u32 %v799, 7
      %v801 = vsub.s32 0, %v800
      %v802 = vrot.slane %v798, %v801
      %v803 = vlaneseq
      %v804 = vshrl.u32 %v803, 7
      %v805 = vsub.s32 1, %v804
      %v806 = vrot.slane %v798, %v805
      %vm807 = vcmp.eq.s32.totalorder %v802, 1
      %vm808 = vcmp.eq.s32.totalorder %v806, 1
      %810 = vset.pattern.permute.xlu0 0
      %811 = vperm.xlu0 %810, %v274
      %v812 = vpop.permute.xlu0 %811
      %v814 = vsel %vm807, %v790, %v812
      %v815 = vsel %vm808, %v794, %v812
      %v816 = vadd.f32 %v711, %v814
      %v817 = vadd.f32 %v712, %v815
      %v818 = vadd.f32 %v746, %v781
      %v819 = vadd.f32 %v747, %v782
      %v820 = vadd.f32 %v818, %v816
      %v821 = vadd.f32 %v819, %v817
      %822 = vst [vmem:[%s251] sm:$0xff] %v820
      %823 = vst [vmem:[%s251 + $0x8] sm:$0xff] %v821
      %p824 = scmp.lt.s32.totalorder %s17, 1
      %s825 = scalar_select %p824, %s17, 1
      %s826 = smul.addr %s825, 2
      %s827 = smul.addr %s826, 8
      %s828 = scalar_lea.vmem %s6, %s827
      // Predicated region
      $region45: #{_lambda_.1} parent=43 // pred_check
        %p829 = pneg %p166
      $region46: #{_lambda_.1} parent=43 // pred_check_branch
        %831 = sbr.rel (%p829) target = $region48
      $region47: #{_lambda_.1} parent=43 // pred_region
        _
      $region48: #{_lambda_.1} parent=43 // pred_fallthru
        _
    $region44: #{_lambda_.1} parent=5 // pred_fallthru
      _
    %p832 = scmp.le.s32.totalorder 2, %s12
    // Predicated region
    $region49: #{_lambda_.1} parent=5 // pred_check
      %p833 = pneg %p832
    $region50: #{_lambda_.1} parent=5 // pred_check_branch
      %835 = sbr.rel (%p833) target = $region52
    $region51: #{_lambda_.1} parent=5 // pred_region
      %s836 = ssub.s32 %s12, 2
      // Predicated region
      $region53: #{_lambda_.1} parent=51 // pred_check
        %p837 = pneg %p172
      $region54: #{_lambda_.1} parent=51 // pred_check_branch
        %839 = sbr.rel (%p837) target = $region56
      $region55: #{_lambda_.1} parent=51 // pred_region
        %p840 = scmp.lt.s32.totalorder %s18, 1
        %s841 = scalar_select %p840, %s18, 1
        %s842 = smul.addr %s841, 2
        %s843 = smul.addr %s842, 8
        %s844 = scalar_lea.vmem %s6, %s843
      $region56: #{_lambda_.1} parent=51 // pred_fallthru
        _
    $region52: #{_lambda_.1} parent=5 // pred_fallthru
      _
  $region6: #{_lambda_.1} parent=0 // loop_footer
    %s16 = sadd.s32 1, %s12
  $region7: #{_lambda_.1} parent=0 // loop_footer_branch
    %11 = sbr.rel target = $region3
  $region8: #{_lambda_.1} parent=0 // loop_exit
    _

</llo_original>
